<compile_context>
chip_gen: v5e
topology: v5e:2x2
jax: 0.10.0
libtpu: 0.0.40
codegen_flags: <defaults>
</compile_context>

<pallas_src>
import jax
import jax.numpy as jnp
from jax.experimental import pallas as pl
from jax.experimental.pallas import tpu as pltpu

_LANE = 128
_SUBLANE = 8


def _round_up(n, m):
    return ((n + m - 1) // m) * m


def _res_predict_kernel(x_ref, u_ref, w1x_ref, w1u_ref, b1_ref,
                        w2_ref, b2_ref, w3_ref, b3_ref, o_ref):
    x = x_ref[...]
    # h1 = relu(x @ W1x + u @ W1u + b1)    (== relu(cat(x, u) @ W1 + b1))
    h1 = (jnp.dot(x, w1x_ref[...], preferred_element_type=jnp.float32)
          + jnp.dot(u_ref[...], w1u_ref[...], preferred_element_type=jnp.float32)
          + b1_ref[...])
    h1 = jnp.maximum(h1, 0.0)
    # h2 = relu(h1 @ W2 + b2)
    h2 = jnp.dot(h1, w2_ref[...], preferred_element_type=jnp.float32) + b2_ref[...]
    h2 = jnp.maximum(h2, 0.0)
    # out = x + h2 @ W3 + b3   (residual)
    o_ref[...] = (x
                  + jnp.dot(h2, w3_ref[...], preferred_element_type=jnp.float32)
                  + b3_ref[...])


def prepare_params(params, dtype=jnp.float32):
    """One-time conversion of PyTorch-convention params into kernel layout.

    - transpose to (in, out) so the kernel does activations @ W on the MXU
    - split W1 into its x- and u- slabs (kernel fuses away the concat)
    - zero-pad every feature axis to a multiple of 128 (lane-dense layout);
      padded columns stay exactly zero through ReLU / matmul / residual.
    `dtype=jnp.bfloat16` is a valid choice on v6e/v7x for 2x MXU throughput
    and half the resident-weight VMEM; kept f32 here to match the reference.
    """
    x_dim = params["out_w"].shape[0]
    hid = params["f1_w"].shape[0]
    u_dim = params["f1_w"].shape[1] - x_dim

    xd_p = _round_up(x_dim, _LANE)
    ud_p = _round_up(u_dim, _LANE)
    hid_p = _round_up(hid, _LANE)

    def pad2(a, rows, cols):
        a = a.astype(dtype)
        return jnp.pad(a, ((0, rows - a.shape[0]), (0, cols - a.shape[1])))

    w1 = params["f1_w"].T                      # (x_dim + u_dim, hid)
    return {
        "w1x": pad2(w1[:x_dim], xd_p, hid_p),  # (xd_p, hid_p)
        "w1u": pad2(w1[x_dim:], ud_p, hid_p),  # (ud_p, hid_p)
        "b1": pad2(params["f1_b"].reshape(1, -1), 1, hid_p),
        "w2": pad2(params["f2_w"].T, hid_p, hid_p),
        "b2": pad2(params["f2_b"].reshape(1, -1), 1, hid_p),
        "w3": pad2(params["out_w"].T, hid_p, xd_p),
        "b3": pad2(params["out_b"].reshape(1, -1), 1, xd_p),
    }


@jax.jit
def res_predict_forward(x, u, prep):
    """Pallas implementation of ResPredict.forward. Returns (B, x_dim) f32."""
    x = x.astype(jnp.float32)
    u = u.astype(jnp.float32)
    B, x_dim = x.shape
    u_dim = u.shape[1]
    xd_p = prep["w1x"].shape[0]
    ud_p = prep["w1u"].shape[0]
    hid_p = prep["w2"].shape[0]

    # Batch tile: large enough to amortize the ~0.35us/step overhead, small
    # enough to leave VMEM for the resident weights.
    tb = min(512, _round_up(B, _SUBLANE))
    b_p = _round_up(B, tb)

    # Zero-pad activations to padded batch / feature widths (layout plumbing).
    x_p = jnp.pad(x, ((0, b_p - B), (0, xd_p - x_dim)))
    u_p = jnp.pad(u, ((0, b_p - B), (0, ud_p - u_dim)))

    def act_spec(feat):
        return pl.BlockSpec((tb, feat), lambda i: (i, 0))

    def const_spec(shape):
        return pl.BlockSpec(shape, lambda i: (0, 0))

    # VMEM budget: resident weights (x2 buffering slack) + pipelined
    # activation tiles + hidden intermediates, clamped to v7x's 64 MiB.
    w_bytes = sum(int(prep[k].size) * prep[k].dtype.itemsize for k in prep)
    act_bytes = tb * (2 * xd_p + ud_p + 2 * hid_p) * 4
    vmem_limit = int(min(2 * w_bytes + 4 * act_bytes + (8 << 20), 64 << 20))

    out_p = pl.pallas_call(
        _res_predict_kernel,
        out_shape=jax.ShapeDtypeStruct((b_p, xd_p), jnp.float32),
        grid=(b_p // tb,),
        in_specs=[
            act_spec(xd_p),                      # x tile (also residual input)
            act_spec(ud_p),                      # u tile
            const_spec(prep["w1x"].shape),       # weights/biases: VMEM-resident
            const_spec(prep["w1u"].shape),
            const_spec(prep["b1"].shape),
            const_spec(prep["w2"].shape),
            const_spec(prep["b2"].shape),
            const_spec(prep["w3"].shape),
            const_spec(prep["b3"].shape),
        ],
        out_specs=act_spec(xd_p),
        input_output_aliases={0: 0},             # out reuses padded-x HBM buffer
        compiler_params=pltpu.CompilerParams(
            dimension_semantics=("parallel",),
            vmem_limit_bytes=vmem_limit),
    )(x_p, u_p, prep["w1x"], prep["w1u"], prep["b1"],
      prep["w2"], prep["b2"], prep["w3"], prep["b3"])

    # TODO(synk): PyTorch returns out.double(); TPU has no native f64, keep f32.
    return out_p[:B, :x_dim]


def make_params(key, x_dim, u_dim, hid_units):
    """Deterministic parameter init mirroring nn.Linear shapes."""
    ks = jax.random.split(key, 6)

    def linear(kw, kb, fan_in, fan_out):
        bound = 1.0 / jnp.sqrt(fan_in)
        w = jax.random.uniform(kw, (fan_out, fan_in), jnp.float32, -bound, bound)
        b = jax.random.uniform(kb, (fan_out,), jnp.float32, -bound, bound)
        return w, b

    f1_w, f1_b = linear(ks[0], ks[1], x_dim + u_dim, hid_units)
    f2_w, f2_b = linear(ks[2], ks[3], hid_units, hid_units)
    out_w, out_b = linear(ks[4], ks[5], hid_units, x_dim)
    return {"f1_w": f1_w, "f1_b": f1_b,
            "f2_w": f2_w, "f2_b": f2_b,
            "out_w": out_w, "out_b": out_b}


def _reference_forward(x, u, params):
    """Pure-JAX reference for correctness checking."""
    xu = jnp.concatenate([x, u], axis=1).astype(jnp.float32)
    h1 = jax.nn.relu(xu @ params["f1_w"].T + params["f1_b"])
    h2 = jax.nn.relu(h1 @ params["f2_w"].T + params["f2_b"])
    return x.astype(jnp.float32) + h2 @ params["out_w"].T + params["out_b"]


if __name__ == "__main__":
    B, x_dim, u_dim, hid_units = 2, 4, 2, 32

    key = jax.random.PRNGKey(0)
    kx, ku, kp = jax.random.split(key, 3)
    x = jax.random.normal(kx, (B, x_dim), jnp.float32)
    u = jax.random.normal(ku, (B, u_dim), jnp.float32)
    params = make_params(kp, x_dim, u_dim, hid_units)

    prep = prepare_params(params)                # one-time weight prep
    out = res_predict_forward(x, u, prep)
    out = jax.block_until_ready(out)

    ref = _reference_forward(x, u, params)
    assert out.shape == (B, x_dim)
    assert jnp.allclose(out, ref, atol=1e-5, rtol=1e-5), "mismatch vs reference"

    print("KERNEL_OK")
</pallas_src>

<mosaic_0001>
module attributes {stable_mosaic.version = 11 : i64} {
  func.func @_res_predict_kernel(%arg0: i32, %arg1: memref<8x128xf32, #tpu.memory_space<vmem>>, %arg2: memref<8x128xf32, #tpu.memory_space<vmem>>, %arg3: memref<128x128xf32, #tpu.memory_space<vmem>>, %arg4: memref<128x128xf32, #tpu.memory_space<vmem>>, %arg5: memref<1x128xf32, #tpu.memory_space<vmem>>, %arg6: memref<128x128xf32, #tpu.memory_space<vmem>>, %arg7: memref<1x128xf32, #tpu.memory_space<vmem>>, %arg8: memref<128x128xf32, #tpu.memory_space<vmem>>, %arg9: memref<1x128xf32, #tpu.memory_space<vmem>>, %arg10: memref<8x128xf32, #tpu.memory_space<vmem>>) attributes {dimension_semantics = [#tpu.dimension_semantics<parallel>], iteration_bounds = array<i64: 1>, scalar_prefetch = 0 : i64, scratch_operands = 0 : i64, tpu.core_type = #tpu.core_type<tc>, window_params = [{transform_indices = @transform_0, window_bounds = array<i64: 8, 128>}, {transform_indices = @transform_1, window_bounds = array<i64: 8, 128>}, {pipeline_mode = #tpu.pipeline_mode<synchronous>, transform_indices = @transform_2, window_bounds = array<i64: 128, 128>}, {pipeline_mode = #tpu.pipeline_mode<synchronous>, transform_indices = @transform_3, window_bounds = array<i64: 128, 128>}, {pipeline_mode = #tpu.pipeline_mode<synchronous>, transform_indices = @transform_4, window_bounds = array<i64: 1, 128>}, {pipeline_mode = #tpu.pipeline_mode<synchronous>, transform_indices = @transform_5, window_bounds = array<i64: 128, 128>}, {pipeline_mode = #tpu.pipeline_mode<synchronous>, transform_indices = @transform_6, window_bounds = array<i64: 1, 128>}, {pipeline_mode = #tpu.pipeline_mode<synchronous>, transform_indices = @transform_7, window_bounds = array<i64: 128, 128>}, {pipeline_mode = #tpu.pipeline_mode<synchronous>, transform_indices = @transform_8, window_bounds = array<i64: 1, 128>}, {transform_indices = @transform_9, window_bounds = array<i64: 8, 128>}]} {
    %c0 = arith.constant 0 : index
    %c0_0 = arith.constant 0 : index
    %0 = vector.load %arg1[%c0, %c0_0] : memref<8x128xf32, #tpu.memory_space<vmem>>, vector<8x128xf32>
    %c0_1 = arith.constant 0 : index
    %c0_2 = arith.constant 0 : index
    %1 = vector.load %arg3[%c0_1, %c0_2] : memref<128x128xf32, #tpu.memory_space<vmem>>, vector<128x128xf32>
    %cst = arith.constant dense<0.000000e+00> : vector<8x128xf32>
    %2 = tpu.matmul %0, %1, %cst {dimension_numbers = #tpu.dot_dimension_numbers<[1], [0], [0], [1], [0, 0, 1, 1], [], []>} : vector<8x128xf32>, vector<128x128xf32>, vector<8x128xf32> -> vector<8x128xf32>
    %c0_3 = arith.constant 0 : index
    %c0_4 = arith.constant 0 : index
    %3 = vector.load %arg2[%c0_3, %c0_4] : memref<8x128xf32, #tpu.memory_space<vmem>>, vector<8x128xf32>
    %c0_5 = arith.constant 0 : index
    %c0_6 = arith.constant 0 : index
    %4 = vector.load %arg4[%c0_5, %c0_6] : memref<128x128xf32, #tpu.memory_space<vmem>>, vector<128x128xf32>
    %cst_7 = arith.constant dense<0.000000e+00> : vector<8x128xf32>
    %5 = tpu.matmul %3, %4, %cst_7 {dimension_numbers = #tpu.dot_dimension_numbers<[1], [0], [0], [1], [0, 0, 1, 1], [], []>} : vector<8x128xf32>, vector<128x128xf32>, vector<8x128xf32> -> vector<8x128xf32>
    %6 = arith.addf %2, %5 : vector<8x128xf32>
    %c0_8 = arith.constant 0 : index
    %c0_9 = arith.constant 0 : index
    %7 = vector.load %arg5[%c0_8, %c0_9] : memref<1x128xf32, #tpu.memory_space<vmem>>, vector<1x128xf32>
    %8 = vector.broadcast %7 : vector<1x128xf32> to vector<8x128xf32>
    %9 = arith.addf %6, %8 : vector<8x128xf32>
    %cst_10 = arith.constant 0.000000e+00 : f32
    %10 = vector.broadcast %cst_10 : f32 to vector<8x128xf32>
    %11 = arith.maximumf %9, %10 : vector<8x128xf32>
    %c0_11 = arith.constant 0 : index
    %c0_12 = arith.constant 0 : index
    %12 = vector.load %arg6[%c0_11, %c0_12] : memref<128x128xf32, #tpu.memory_space<vmem>>, vector<128x128xf32>
    %cst_13 = arith.constant dense<0.000000e+00> : vector<8x128xf32>
    %13 = tpu.matmul %11, %12, %cst_13 {dimension_numbers = #tpu.dot_dimension_numbers<[1], [0], [0], [1], [0, 0, 1, 1], [], []>} : vector<8x128xf32>, vector<128x128xf32>, vector<8x128xf32> -> vector<8x128xf32>
    %c0_14 = arith.constant 0 : index
    %c0_15 = arith.constant 0 : index
    %14 = vector.load %arg7[%c0_14, %c0_15] : memref<1x128xf32, #tpu.memory_space<vmem>>, vector<1x128xf32>
    %15 = vector.broadcast %14 : vector<1x128xf32> to vector<8x128xf32>
    %16 = arith.addf %13, %15 : vector<8x128xf32>
    %cst_16 = arith.constant 0.000000e+00 : f32
    %17 = vector.broadcast %cst_16 : f32 to vector<8x128xf32>
    %18 = arith.maximumf %16, %17 : vector<8x128xf32>
    %c0_17 = arith.constant 0 : index
    %c0_18 = arith.constant 0 : index
    %19 = vector.load %arg8[%c0_17, %c0_18] : memref<128x128xf32, #tpu.memory_space<vmem>>, vector<128x128xf32>
    %cst_19 = arith.constant dense<0.000000e+00> : vector<8x128xf32>
    %20 = tpu.matmul %18, %19, %cst_19 {dimension_numbers = #tpu.dot_dimension_numbers<[1], [0], [0], [1], [0, 0, 1, 1], [], []>} : vector<8x128xf32>, vector<128x128xf32>, vector<8x128xf32> -> vector<8x128xf32>
    %21 = arith.addf %0, %20 : vector<8x128xf32>
    %c0_20 = arith.constant 0 : index
    %c0_21 = arith.constant 0 : index
    %22 = vector.load %arg9[%c0_20, %c0_21] : memref<1x128xf32, #tpu.memory_space<vmem>>, vector<1x128xf32>
    %23 = vector.broadcast %22 : vector<1x128xf32> to vector<8x128xf32>
    %24 = arith.addf %21, %23 : vector<8x128xf32>
    %c0_22 = arith.constant 0 : index
    %c0_23 = arith.constant 0 : index
    %25 = vector.load %arg10[%c0_22, %c0_23] : memref<8x128xf32, #tpu.memory_space<vmem>>, vector<8x128xf32>
    tpu.vector_store %arg10[%c0_22, %c0_23], %24 {strides = array<i32>} : memref<8x128xf32, #tpu.memory_space<vmem>>, vector<8x128xf32>,
    return
  }
  func.func @transform_0(%arg0: i32) -> (i32, i32) {
    %c0_i32 = arith.constant 0 : i32
    %c0_i32_0 = arith.constant 0 : i32
    return %arg0, %c0_i32 : i32, i32
  }
  func.func @transform_1(%arg0: i32) -> (i32, i32) {
    %c0_i32 = arith.constant 0 : i32
    %c0_i32_0 = arith.constant 0 : i32
    return %arg0, %c0_i32 : i32, i32
  }
  func.func @transform_2(%arg0: i32) -> (i32, i32) {
    %c0_i32 = arith.constant 0 : i32
    %c0_i32_0 = arith.constant 0 : i32
    %c0_i32_1 = arith.constant 0 : i32
    return %c0_i32, %c0_i32_0 : i32, i32
  }
  func.func @transform_3(%arg0: i32) -> (i32, i32) {
    %c0_i32 = arith.constant 0 : i32
    %c0_i32_0 = arith.constant 0 : i32
    %c0_i32_1 = arith.constant 0 : i32
    return %c0_i32, %c0_i32_0 : i32, i32
  }
  func.func @transform_4(%arg0: i32) -> (i32, i32) {
    %c0_i32 = arith.constant 0 : i32
    %c0_i32_0 = arith.constant 0 : i32
    %c0_i32_1 = arith.constant 0 : i32
    return %c0_i32, %c0_i32_0 : i32, i32
  }
  func.func @transform_5(%arg0: i32) -> (i32, i32) {
    %c0_i32 = arith.constant 0 : i32
    %c0_i32_0 = arith.constant 0 : i32
    %c0_i32_1 = arith.constant 0 : i32
    return %c0_i32, %c0_i32_0 : i32, i32
  }
  func.func @transform_6(%arg0: i32) -> (i32, i32) {
    %c0_i32 = arith.constant 0 : i32
    %c0_i32_0 = arith.constant 0 : i32
    %c0_i32_1 = arith.constant 0 : i32
    return %c0_i32, %c0_i32_0 : i32, i32
  }
  func.func @transform_7(%arg0: i32) -> (i32, i32) {
    %c0_i32 = arith.constant 0 : i32
    %c0_i32_0 = arith.constant 0 : i32
    %c0_i32_1 = arith.constant 0 : i32
    return %c0_i32, %c0_i32_0 : i32, i32
  }
  func.func @transform_8(%arg0: i32) -> (i32, i32) {
    %c0_i32 = arith.constant 0 : i32
    %c0_i32_0 = arith.constant 0 : i32
    %c0_i32_1 = arith.constant 0 : i32
    return %c0_i32, %c0_i32_0 : i32, i32
  }
  func.func @transform_9(%arg0: i32) -> (i32, i32) {
    %c0_i32 = arith.constant 0 : i32
    %c0_i32_0 = arith.constant 0 : i32
    return %arg0, %c0_i32 : i32, i32
  }
}

</mosaic_0001>

<llo_original>
// kernel: res_predict_forward.1
$region0: #{res_predict_forward.1}
  #allocation0 [shape = 'u32[]', space=smem, size = 0x4, offset = 0x4, fixed_abs, tag = 'smem constant byte address 0x4 - core index']
  #allocation1 [shape = 'u32[72,128]{1,0:T(1,128)}', space=vmem, size = 0x9000, scoped, tag = 'internal scratch']
  %s0 = inlined_call_operand.vmem [shape: f32[8,128], index: 0, kind: input, shape index: {}, may-alias: {0,9}]
  %s1 = inlined_call_operand.vmem [shape: f32[8,128], index: 1, kind: input, shape index: {}]
  %s2 = inlined_call_operand.hbm [shape: f32[128,128], index: 2, kind: input, shape index: {}]
  %s3 = inlined_call_operand.hbm [shape: f32[128,128], index: 3, kind: input, shape index: {}]
  %s4 = inlined_call_operand.vmem [shape: f32[1,128], index: 4, kind: input, shape index: {}]
  %s5 = inlined_call_operand.hbm [shape: f32[128,128], index: 5, kind: input, shape index: {}]
  %s6 = inlined_call_operand.vmem [shape: f32[1,128], index: 6, kind: input, shape index: {}]
  %s7 = inlined_call_operand.hbm [shape: f32[128,128], index: 7, kind: input, shape index: {}]
  %s8 = inlined_call_operand.vmem [shape: f32[1,128], index: 8, kind: input, shape index: {}]
  %s9 = inlined_call_operand.vmem [shape: f32[8,128], index: 9, kind: output, shape index: {}, may-alias: {0,9}]
  %s10 = sld [smem:[#allocation0]]
  $region62: #{res_predict_forward.1} parent=0
    _
  %s12 = ssub.s32 1, %s10
  %s13 = scalar_select 0, %s12, %s10
  $region1: #{res_predict_forward.1} parent=0
    #allocation2 [shape = 'u8[65536]{0}', space=vmem, size = 0x10000, scoped, tag = 'input window, operand 2, single buffered']
    #allocation3 [shape = 's32[1]{0}', space=sflag, size = 0x4, scoped, tag = 'scoped memory for res_predict_forward.1']
    #allocation4 [shape = 'u8[65536]{0}', space=vmem, size = 0x10000, scoped, tag = 'input window, operand 3, single buffered']
    #allocation5 [shape = 's32[1]{0}', space=sflag, size = 0x4, scoped, tag = 'scoped memory for res_predict_forward.1']
    #allocation6 [shape = 'u8[65536]{0}', space=vmem, size = 0x10000, scoped, tag = 'input window, operand 5, single buffered']
    #allocation7 [shape = 'u8[65536]{0}', space=vmem, size = 0x10000, scoped, tag = 'input window, operand 7, single buffered']
    #allocation8 [shape = 's32[1]{0}', space=sflag, size = 0x4, scoped, tag = 'scoped memory for res_predict_forward.1']
    %14 = vsyncpa [#allocation3], 0
    %15 = vsyncpa [#allocation5], 0
    %16 = vsyncpa [#allocation8], 0
    // Predicated region
    $region2: #{res_predict_forward.1} parent=1 // pred_check
      _
    $region3: #{res_predict_forward.1} parent=1 // pred_check_branch
      %18 = sbr.rel (0) target = $region5
    $region4: #{res_predict_forward.1} parent=1 // pred_region
      _
    $region5: #{res_predict_forward.1} parent=1 // pred_fallthru
      _
    // Predicated region
    $region6: #{res_predict_forward.1} parent=1 // pred_check
      _
    $region7: #{res_predict_forward.1} parent=1 // pred_check_branch
      %20 = sbr.rel (0) target = $region9
    $region8: #{res_predict_forward.1} parent=1 // pred_region
      _
    $region9: #{res_predict_forward.1} parent=1 // pred_fallthru
      _
    // Predicated region
    $region10: #{res_predict_forward.1} parent=1 // pred_check
      _
    $region11: #{res_predict_forward.1} parent=1 // pred_check_branch
      %22 = sbr.rel (0) target = $region13
    $region12: #{res_predict_forward.1} parent=1 // pred_region
      %24 = vsyncadd [#allocation3], 0
      %s25 = sshll.u32 %s2, 4
      %s26 = int_to_ptr.hbm [resolvable:$true] %s25
      %s27 = sshll.u32 [#allocation2], 4
      %s28 = int_to_ptr.vmem [resolvable:$true] %s27
      %33 = dma.hbm_to_vmem [thread:$0]  %s26, 2048, %s28, [#allocation3], 128, 128, 8
    $region13: #{res_predict_forward.1} parent=1 // pred_fallthru
      _
    // Predicated region
    $region14: #{res_predict_forward.1} parent=1 // pred_check
      _
    $region15: #{res_predict_forward.1} parent=1 // pred_check_branch
      %35 = sbr.rel (0) target = $region17
    $region16: #{res_predict_forward.1} parent=1 // pred_region
      %37 = vsyncadd [#allocation5], 0
      %s38 = sshll.u32 %s3, 4
      %s39 = int_to_ptr.hbm [resolvable:$true] %s38
      %s40 = sshll.u32 [#allocation4], 4
      %s41 = int_to_ptr.vmem [resolvable:$true] %s40
      %46 = dma.hbm_to_vmem [thread:$0]  %s39, 2048, %s41, [#allocation5], 128, 128, 8
    $region17: #{res_predict_forward.1} parent=1 // pred_fallthru
      _
    // Predicated region
    $region18: #{res_predict_forward.1} parent=1 // pred_check
      _
    $region19: #{res_predict_forward.1} parent=1 // pred_check_branch
      %48 = sbr.rel (0) target = $region21
    $region20: #{res_predict_forward.1} parent=1 // pred_region
      _
    $region21: #{res_predict_forward.1} parent=1 // pred_fallthru
      _
    // Predicated region
    $region22: #{res_predict_forward.1} parent=1 // pred_check
      _
    $region23: #{res_predict_forward.1} parent=1 // pred_check_branch
      %50 = sbr.rel (0) target = $region25
    $region24: #{res_predict_forward.1} parent=1 // pred_region
      %52 = vsyncadd [#allocation5], 0
      %s53 = sshll.u32 %s5, 4
      %s54 = int_to_ptr.hbm [resolvable:$true] %s53
      %s55 = sshll.u32 [#allocation6], 4
      %s56 = int_to_ptr.vmem [resolvable:$true] %s55
      %61 = dma.hbm_to_vmem [thread:$0]  %s54, 2048, %s56, [#allocation5], 128, 128, 8
    $region25: #{res_predict_forward.1} parent=1 // pred_fallthru
      _
    // Predicated region
    $region26: #{res_predict_forward.1} parent=1 // pred_check
      _
    $region27: #{res_predict_forward.1} parent=1 // pred_check_branch
      %63 = sbr.rel (0) target = $region29
    $region28: #{res_predict_forward.1} parent=1 // pred_region
      _
    $region29: #{res_predict_forward.1} parent=1 // pred_fallthru
      _
    // Predicated region
    $region30: #{res_predict_forward.1} parent=1 // pred_check
      _
    $region31: #{res_predict_forward.1} parent=1 // pred_check_branch
      %65 = sbr.rel (0) target = $region33
    $region32: #{res_predict_forward.1} parent=1 // pred_region
      %67 = vsyncadd [#allocation8], 0
      %s68 = sshll.u32 %s7, 4
      %s69 = int_to_ptr.hbm [resolvable:$true] %s68
      %s70 = sshll.u32 [#allocation7], 4
      %s71 = int_to_ptr.vmem [resolvable:$true] %s70
      %76 = dma.hbm_to_vmem [thread:$0]  %s69, 2048, %s71, [#allocation8], 128, 128, 8
    $region33: #{res_predict_forward.1} parent=1 // pred_fallthru
      _
    // Predicated region
    $region34: #{res_predict_forward.1} parent=1 // pred_check
      _
    $region35: #{res_predict_forward.1} parent=1 // pred_check_branch
      %78 = sbr.rel (0) target = $region37
    $region36: #{res_predict_forward.1} parent=1 // pred_region
      _
    $region37: #{res_predict_forward.1} parent=1 // pred_fallthru
      _
    // Predicated region
    $region38: #{res_predict_forward.1} parent=1 // pred_check
      _
    $region39: #{res_predict_forward.1} parent=1 // pred_check_branch
      %80 = sbr.rel (0) target = $region41
    $region40: #{res_predict_forward.1} parent=1 // pred_region
      %82 = dma.done [#allocation3], 2048
    $region41: #{res_predict_forward.1} parent=1 // pred_fallthru
      _
    // Predicated region
    $region42: #{res_predict_forward.1} parent=1 // pred_check
      _
    $region43: #{res_predict_forward.1} parent=1 // pred_check_branch
      %84 = sbr.rel (0) target = $region45
    $region44: #{res_predict_forward.1} parent=1 // pred_region
      %86 = dma.done [#allocation5], 2048
    $region45: #{res_predict_forward.1} parent=1 // pred_fallthru
      _
    // Predicated region
    $region46: #{res_predict_forward.1} parent=1 // pred_check
      _
    $region47: #{res_predict_forward.1} parent=1 // pred_check_branch
      %88 = sbr.rel (0) target = $region49
    $region48: #{res_predict_forward.1} parent=1 // pred_region
      %90 = dma.done [#allocation5], 2048
    $region49: #{res_predict_forward.1} parent=1 // pred_fallthru
      _
    // Predicated region
    $region50: #{res_predict_forward.1} parent=1 // pred_check
      _
    $region51: #{res_predict_forward.1} parent=1 // pred_check_branch
      %92 = sbr.rel (0) target = $region53
    $region52: #{res_predict_forward.1} parent=1 // pred_region
      %94 = dma.done [#allocation8], 2048
    $region53: #{res_predict_forward.1} parent=1 // pred_fallthru
      _
    %v95 = vld [vmem:[%s0] sm:$0xff]
    %v96 = vld [vmem:[#allocation2] sm:$0xff]
    %v97 = vld [vmem:[#allocation2 + $0x8] sm:$0xff]
    %v98 = vld [vmem:[#allocation2 + $0x10] sm:$0xff]
    %v99 = vld [vmem:[#allocation2 + $0x18] sm:$0xff]
    %v100 = vld [vmem:[#allocation2 + $0x20] sm:$0xff]
    %v101 = vld [vmem:[#allocation2 + $0x28] sm:$0xff]
    %v102 = vld [vmem:[#allocation2 + $0x30] sm:$0xff]
    %v103 = vld [vmem:[#allocation2 + $0x38] sm:$0xff]
    %v104 = vld [vmem:[#allocation2 + $0x40] sm:$0xff]
    %v105 = vld [vmem:[#allocation2 + $0x48] sm:$0xff]
    %v106 = vld [vmem:[#allocation2 + $0x50] sm:$0xff]
    %v107 = vld [vmem:[#allocation2 + $0x58] sm:$0xff]
    %v108 = vld [vmem:[#allocation2 + $0x60] sm:$0xff]
    %v109 = vld [vmem:[#allocation2 + $0x68] sm:$0xff]
    %v110 = vld [vmem:[#allocation2 + $0x70] sm:$0xff]
    %v111 = vld [vmem:[#allocation2 + $0x78] sm:$0xff]
    %v112 = vld [vmem:[%s1] sm:$0xff]
    %v113 = vld [vmem:[#allocation4] sm:$0xff]
    %v114 = vld [vmem:[#allocation4 + $0x8] sm:$0xff]
    %v115 = vld [vmem:[#allocation4 + $0x10] sm:$0xff]
    %v116 = vld [vmem:[#allocation4 + $0x18] sm:$0xff]
    %v117 = vld [vmem:[#allocation4 + $0x20] sm:$0xff]
    %v118 = vld [vmem:[#allocation4 + $0x28] sm:$0xff]
    %v119 = vld [vmem:[#allocation4 + $0x30] sm:$0xff]
    %v120 = vld [vmem:[#allocation4 + $0x38] sm:$0xff]
    %v121 = vld [vmem:[#allocation4 + $0x40] sm:$0xff]
    %v122 = vld [vmem:[#allocation4 + $0x48] sm:$0xff]
    %v123 = vld [vmem:[#allocation4 + $0x50] sm:$0xff]
    %v124 = vld [vmem:[#allocation4 + $0x58] sm:$0xff]
    %v125 = vld [vmem:[#allocation4 + $0x60] sm:$0xff]
    %v126 = vld [vmem:[#allocation4 + $0x68] sm:$0xff]
    %v127 = vld [vmem:[#allocation4 + $0x70] sm:$0xff]
    %v128 = vld [vmem:[#allocation4 + $0x78] sm:$0xff]
    %129 = vmatpush.msra.mxu0 %v128
    %130 = vmatpush.msra.mxu0 %v127
    %131 = vmatpush.msra.mxu0 %v126
    %132 = vmatpush.msra.mxu0 %v125
    %133 = vmatpush.msra.mxu0 %v124
    %134 = vmatpush.msra.mxu0 %v123
    %135 = vmatpush.msra.mxu0 %v122
    %136 = vmatpush.msra.mxu0 %v121
    %137 = vmatpush.msra.mxu0 %v120
    %138 = vmatpush.msra.mxu0 %v119
    %139 = vmatpush.msra.mxu0 %v118
    %140 = vmatpush.msra.mxu0 %v117
    %141 = vmatpush.msra.mxu0 %v116
    %142 = vmatpush.msra.mxu0 %v115
    %143 = vmatpush.msra.mxu0 %v114
    %144 = vmatpush.msra.mxu0 %v113
    %145 = vmatmul.f32.gmra.mxu0 %v112
    %v146 = vpop.f32.mrf.mxu0
    %v147 = vadd.f32 0.0, %v146
    %148 = vdwg.mxu0
    %149 = vmatpush.msra.mxu0 %v111
    %150 = vmatpush.msra.mxu0 %v110
    %151 = vmatpush.msra.mxu0 %v109
    %152 = vmatpush.msra.mxu0 %v108
    %153 = vmatpush.msra.mxu0 %v107
    %154 = vmatpush.msra.mxu0 %v106
    %155 = vmatpush.msra.mxu0 %v105
    %156 = vmatpush.msra.mxu0 %v104
    %157 = vmatpush.msra.mxu0 %v103
    %158 = vmatpush.msra.mxu0 %v102
    %159 = vmatpush.msra.mxu0 %v101
    %160 = vmatpush.msra.mxu0 %v100
    %161 = vmatpush.msra.mxu0 %v99
    %162 = vmatpush.msra.mxu0 %v98
    %163 = vmatpush.msra.mxu0 %v97
    %164 = vmatpush.msra.mxu0 %v96
    %165 = vmatmul.f32.gmra.mxu0 %v95
    %v166 = vpop.f32.mrf.mxu0
    %v167 = vadd.f32 %v147, %v166
    %168 = vdwg.mxu0
    %v169 = vld [vmem:[%s4] sm:$0x1]
    %v171 = vperm.slane %v169, 0
    %v173 = vadd.f32 %v167, %v171
    %v174 = vmax.f32 %v173, 0.0
    %v175 = vld [vmem:[#allocation6] sm:$0xff]
    %v176 = vld [vmem:[#allocation6 + $0x8] sm:$0xff]
    %v177 = vld [vmem:[#allocation6 + $0x10] sm:$0xff]
    %v178 = vld [vmem:[#allocation6 + $0x18] sm:$0xff]
    %v179 = vld [vmem:[#allocation6 + $0x20] sm:$0xff]
    %v180 = vld [vmem:[#allocation6 + $0x28] sm:$0xff]
    %v181 = vld [vmem:[#allocation6 + $0x30] sm:$0xff]
    %v182 = vld [vmem:[#allocation6 + $0x38] sm:$0xff]
    %v183 = vld [vmem:[#allocation6 + $0x40] sm:$0xff]
    %v184 = vld [vmem:[#allocation6 + $0x48] sm:$0xff]
    %v185 = vld [vmem:[#allocation6 + $0x50] sm:$0xff]
    %v186 = vld [vmem:[#allocation6 + $0x58] sm:$0xff]
    %v187 = vld [vmem:[#allocation6 + $0x60] sm:$0xff]
    %v188 = vld [vmem:[#allocation6 + $0x68] sm:$0xff]
    %v189 = vld [vmem:[#allocation6 + $0x70] sm:$0xff]
    %v190 = vld [vmem:[#allocation6 + $0x78] sm:$0xff]
    %v191 = vld [vmem:[%s6] sm:$0x1]
    %v193 = vperm.slane %v191, 0
    %195 = vmatpush.msra.mxu0 %v190
    %196 = vmatpush.msra.mxu0 %v189
    %197 = vmatpush.msra.mxu0 %v188
    %198 = vmatpush.msra.mxu0 %v187
    %199 = vmatpush.msra.mxu0 %v186
    %200 = vmatpush.msra.mxu0 %v185
    %201 = vmatpush.msra.mxu0 %v184
    %202 = vmatpush.msra.mxu0 %v183
    %203 = vmatpush.msra.mxu0 %v182
    %204 = vmatpush.msra.mxu0 %v181
    %205 = vmatpush.msra.mxu0 %v180
    %206 = vmatpush.msra.mxu0 %v179
    %207 = vmatpush.msra.mxu0 %v178
    %208 = vmatpush.msra.mxu0 %v177
    %209 = vmatpush.msra.mxu0 %v176
    %210 = vmatpush.msra.mxu0 %v175
    %211 = vmatmul.f32.gmra.mxu0 %v174
    %v212 = vpop.f32.mrf.mxu0
    %v213 = vadd.f32 %v193, %v212
    %214 = vdwg.mxu0
    %v215 = vmax.f32 %v213, 0.0
    %v216 = vld [vmem:[#allocation7] sm:$0xff]
    %v217 = vld [vmem:[#allocation7 + $0x8] sm:$0xff]
    %v218 = vld [vmem:[#allocation7 + $0x10] sm:$0xff]
    %v219 = vld [vmem:[#allocation7 + $0x18] sm:$0xff]
    %v220 = vld [vmem:[#allocation7 + $0x20] sm:$0xff]
    %v221 = vld [vmem:[#allocation7 + $0x28] sm:$0xff]
    %v222 = vld [vmem:[#allocation7 + $0x30] sm:$0xff]
    %v223 = vld [vmem:[#allocation7 + $0x38] sm:$0xff]
    %v224 = vld [vmem:[#allocation7 + $0x40] sm:$0xff]
    %v225 = vld [vmem:[#allocation7 + $0x48] sm:$0xff]
    %v226 = vld [vmem:[#allocation7 + $0x50] sm:$0xff]
    %v227 = vld [vmem:[#allocation7 + $0x58] sm:$0xff]
    %v228 = vld [vmem:[#allocation7 + $0x60] sm:$0xff]
    %v229 = vld [vmem:[#allocation7 + $0x68] sm:$0xff]
    %v230 = vld [vmem:[#allocation7 + $0x70] sm:$0xff]
    %v231 = vld [vmem:[#allocation7 + $0x78] sm:$0xff]
    %232 = vmatpush.msra.mxu0 %v231
    %233 = vmatpush.msra.mxu0 %v230
    %234 = vmatpush.msra.mxu0 %v229
    %235 = vmatpush.msra.mxu0 %v228
    %236 = vmatpush.msra.mxu0 %v227
    %237 = vmatpush.msra.mxu0 %v226
    %238 = vmatpush.msra.mxu0 %v225
    %239 = vmatpush.msra.mxu0 %v224
    %240 = vmatpush.msra.mxu0 %v223
    %241 = vmatpush.msra.mxu0 %v222
    %242 = vmatpush.msra.mxu0 %v221
    %243 = vmatpush.msra.mxu0 %v220
    %244 = vmatpush.msra.mxu0 %v219
    %245 = vmatpush.msra.mxu0 %v218
    %246 = vmatpush.msra.mxu0 %v217
    %247 = vmatpush.msra.mxu0 %v216
    %248 = vmatmul.f32.gmra.mxu0 %v215
    %v249 = vpop.f32.mrf.mxu0
    %v250 = vadd.f32 0.0, %v249
    %251 = vdwg.mxu0
    %v252 = vadd.f32 %v95, %v250
    %v253 = vld [vmem:[%s8] sm:$0x1]
    %v255 = vperm.slane %v253, 0
    %v257 = vadd.f32 %v252, %v255
    %258 = vst [vmem:[%s9] sm:$0xff] %v257
    // Predicated region
    $region54: #{res_predict_forward.1} parent=1 // pred_check
      _
    $region55: #{res_predict_forward.1} parent=1 // pred_check_branch
      %260 = sbr.rel (0) target = $region57
    $region56: #{res_predict_forward.1} parent=1 // pred_region
      _
    $region57: #{res_predict_forward.1} parent=1 // pred_fallthru
      _
    // Predicated region
    $region58: #{res_predict_forward.1} parent=1 // pred_check
      _
    $region59: #{res_predict_forward.1} parent=1 // pred_check_branch
      %262 = sbr.rel (0) target = $region61
    $region60: #{res_predict_forward.1} parent=1 // pred_region
      _
    $region61: #{res_predict_forward.1} parent=1 // pred_fallthru
      _
    %263 = vsyncpa [#allocation3], 1
    %264 = vsyncpa [#allocation5], 1
    %265 = vsyncpa [#allocation8], 1

</llo_original>
